<compile_context>
chip_gen: v6e
topology: v6e:2x2x1
jax: 0.10.0
libtpu: 0.0.40
codegen_flags: <defaults>
</compile_context>

<pallas_src>
import jax
import jax.numpy as jnp
from jax import lax
from jax.experimental import pallas as pl
from jax.experimental.pallas import tpu as pltpu


_K_TAPS = 27        # 3*3*3 taps, row-major (kd, kh, kw)
_CENTER_TAP = 13    # tap index of (kd, kh, kw) = (1, 1, 1)


def _make_kernel(bN):
    """One fused MXU dot per batch element; bN elements per grid step (unrolled)."""
    def kernel(w_ref, p_ref, o_ref):
        w = w_ref[...]                                   # (Ct, K_pad) bf16
        for b in range(bN):                              # static Python -> unrolled
            o_ref[b] = jnp.dot(w, p_ref[b],
                               preferred_element_type=jnp.float32)  # (Ct, P_pad) f32
    return kernel


def _single_tensorcore_chip():
    """True for 1-TC chips (v5e / v6e); False (or unknown) keeps the parallel grid."""
    try:
        kind = jax.devices()[0].device_kind.lower()
    except Exception:
        return False
    return ("v5e" in kind or "v6e" in kind or "lite" in kind)


def concat3d_pallas(x_ncdhw, w0, b0, w1, b1):
    """x_ncdhw: (N, Cin, D, H, W) f32.  Returns (N, C0+C1, D-2, H-2, W-2) f32."""
    N, Cin, D, H, W = x_ncdhw.shape
    C0 = w0.shape[1]
    # NOTE: w1's tap axis MUST be row-major (kd, kh, kw) with kw fastest.  Both the
    # fused-weight reshape below and the wrapper im2col loop silently assume it; a
    # kw-major layout from another framework would pass shape checks but be wrong.
    assert w1.shape[0] == _K_TAPS and w1.shape[1] == Cin, w1.shape
    C1 = w1.shape[2]
    Ct = C0 + C1
    Do, Ho, Wo = D - 2, H - 2, W - 2
    P = Do * Ho * Wo
    K = _K_TAPS * Cin + 1                       # +1: constant-one row carrying the bias
    K_pad = ((K + 7) // 8) * 8
    if K_pad < 128:
        K_pad = 128                             # MXU / sublane aligned contraction dim
    P_pad = ((P + 127) // 128) * 128            # lane-dense, unmasked output stores

    # ---- fuse both branches + bias into one weight: (Ct, K_pad) ----------------
    # column index = tap*Cin + c ; column 27*Cin = bias ; rest zero-padded.
    w_comb = jnp.zeros((Ct, K_pad), jnp.float32)
    w_comb = w_comb.at[:C0, _CENTER_TAP * Cin:(_CENTER_TAP + 1) * Cin].set(
        jnp.transpose(w0, (1, 0)).astype(jnp.float32))            # 1x1x1 branch (crop==center tap)
    w_comb = w_comb.at[C0:, :_K_TAPS * Cin].set(
        jnp.transpose(w1, (2, 0, 1)).reshape(C1, _K_TAPS * Cin).astype(jnp.float32))
    w_comb = w_comb.at[:, _K_TAPS * Cin].set(
        jnp.concatenate([b0, b1]).astype(jnp.float32))            # bias column
    w_comb = w_comb.astype(jnp.bfloat16)

    # ---- wrapper-side im2col (plain XLA slices on HBM; hidden by the pipeline) --
    x_bf = x_ncdhw.astype(jnp.bfloat16)
    rows = []
    for kd in range(3):
        for kh in range(3):
            for kw in range(3):
                rows.append(x_bf[:, :, kd:kd + Do, kh:kh + Ho, kw:kw + Wo]
                            .reshape(N, Cin, P))
    rows.append(jnp.ones((N, 1, P), jnp.bfloat16))                # bias row
    patches = jnp.concatenate(rows, axis=1)                       # (N, K, P)
    patches = jnp.pad(patches, ((0, 0), (0, K_pad - K), (0, P_pad - P)))

    # ---- chip-aware batching -----------------------------------------------------
    # v5e/v6e: one grid step for the whole batch (no per-step pipeline overhead).
    # v7x (2 TCs) and unknown chips: grid=(N,) "parallel" keeps both cores busy.
    bN = N if _single_tensorcore_chip() else 1
    grid = (N // bN,)
    # TODO(synk): if N == 1 on a 2-TC chip (v7x), split P_pad over a second parallel
    # grid axis so the second TensorCore is not idle.

    out = pl.pallas_call(
        _make_kernel(bN),
        out_shape=jax.ShapeDtypeStruct((N, Ct, P_pad), jnp.float32),
        grid_spec=pltpu.PrefetchScalarGridSpec(
            num_scalar_prefetch=0,
            grid=grid,
            in_specs=[
                pl.BlockSpec((Ct, K_pad), lambda n: (0, 0)),
                pl.BlockSpec((bN, K_pad, P_pad), lambda n: (n, 0, 0)),
            ],
            out_specs=pl.BlockSpec((bN, Ct, P_pad), lambda n: (n, 0, 0)),
        ),
        compiler_params=pltpu.CompilerParams(
            dimension_semantics=("parallel",)),
    )(w_comb, patches)

    # (N, Ct, P_pad) -> drop lane padding -> NCDHW (free reshape, no transpose).
    return out[:, :, :P].reshape(N, Ct, Do, Ho, Wo)


def concat3d_reference(x_ncdhw, w0, b0, w1, b1):
    """Pure-JAX f32 reference mirroring the PyTorch semantics (NCDHW)."""
    Cin, C0 = w0.shape
    C1 = w1.shape[2]
    # branch 0: 1x1x1 conv (full spatial)
    w0_oidhw = jnp.transpose(w0, (1, 0)).reshape(C0, Cin, 1, 1, 1)
    y0 = lax.conv_general_dilated(
        x_ncdhw, w0_oidhw, window_strides=(1, 1, 1), padding="VALID",
        dimension_numbers=("NCDHW", "OIDHW", "NCDHW"))
    y0 = y0 + b0[None, :, None, None, None]
    # branch 1: 3x3x3 valid conv (w1 tap axis is row-major (kd, kh, kw))
    w1_oidhw = jnp.transpose(w1.reshape(3, 3, 3, Cin, C1), (4, 3, 0, 1, 2))
    y1 = lax.conv_general_dilated(
        x_ncdhw, w1_oidhw, window_strides=(1, 1, 1), padding="VALID",
        dimension_numbers=("NCDHW", "OIDHW", "NCDHW"))
    y1 = y1 + b1[None, :, None, None, None]
    # center-crop to min spatial shape (only branch 0 needs cropping here)
    d2 = (y0.shape[2] - y1.shape[2]) // 2
    d3 = (y0.shape[3] - y1.shape[3]) // 2
    d4 = (y0.shape[4] - y1.shape[4]) // 2
    y0c = y0[:, :, d2:d2 + y1.shape[2], d3:d3 + y1.shape[3], d4:d4 + y1.shape[4]]
    return jnp.concatenate([y0c, y1], axis=1)


if __name__ == "__main__":
    N, Cin, D, H, W = 2, 4, 8, 8, 8
    C0, C1 = 8, 8

    key = jax.random.PRNGKey(0)
    kx, k0, kb0, k1, kb1 = jax.random.split(key, 5)

    x = jax.random.normal(kx, (N, Cin, D, H, W), dtype=jnp.float32)
    w0 = jax.random.normal(k0, (Cin, C0), dtype=jnp.float32) * 0.1
    b0 = jax.random.normal(kb0, (C0,), dtype=jnp.float32) * 0.1
    w1 = jax.random.normal(k1, (27, Cin, C1), dtype=jnp.float32) * 0.1
    b1 = jax.random.normal(kb1, (C1,), dtype=jnp.float32) * 0.1

    run = jax.jit(concat3d_pallas)
    out = jax.block_until_ready(run(x, w0, b0, w1, b1))

    ref = jax.block_until_ready(concat3d_reference(x, w0, b0, w1, b1))

    assert out.shape == (N, C0 + C1, D - 2, H - 2, W - 2), out.shape
    # bf16 MXU operands (f32 accumulation) -> relaxed tolerance vs f32 reference.
    assert jnp.allclose(out, ref, atol=5e-2, rtol=5e-2), \
        float(jnp.max(jnp.abs(out - ref)))

    print("KERNEL_OK")
</pallas_src>

<mosaic_0001>
module attributes {stable_mosaic.version = 11 : i64} {
  func.func @kernel(%arg0: i32, %arg1: memref<16x128xbf16, #tpu.memory_space<vmem>>, %arg2: memref<1x128x256xbf16, #tpu.memory_space<vmem>>, %arg3: memref<1x16x256xf32, #tpu.memory_space<vmem>>) attributes {dimension_semantics = [#tpu.dimension_semantics<parallel>], iteration_bounds = array<i64: 2>, scalar_prefetch = 0 : i64, scratch_operands = 0 : i64, tpu.core_type = #tpu.core_type<tc>, window_params = [{pipeline_mode = #tpu.pipeline_mode<synchronous>, transform_indices = @transform_0, window_bounds = array<i64: 16, 128>}, {transform_indices = @transform_1, window_bounds = array<i64: 1, 128, 256>}, {transform_indices = @transform_2, window_bounds = array<i64: 1, 16, 256>}]} {
    %c0 = arith.constant 0 : index
    %c0_0 = arith.constant 0 : index
    %0 = vector.load %arg1[%c0, %c0_0] : memref<16x128xbf16, #tpu.memory_space<vmem>>, vector<16x128xbf16>
    %c0_1 = arith.constant 0 : index
    %c0_2 = arith.constant 0 : index
    %c0_3 = arith.constant 0 : index
    %1 = vector.load %arg2[%c0_1, %c0_2, %c0_3] : memref<1x128x256xbf16, #tpu.memory_space<vmem>>, vector<1x128x256xbf16>
    %2 = vector.shape_cast %1 : vector<1x128x256xbf16> to vector<128x256xbf16>
    %cst = arith.constant dense<0.000000e+00> : vector<16x256xf32>
    %3 = tpu.matmul %0, %2, %cst {dimension_numbers = #tpu.dot_dimension_numbers<[1], [0], [0], [1], [0, 0, 1, 1], [], []>} : vector<16x128xbf16>, vector<128x256xbf16>, vector<16x256xf32> -> vector<16x256xf32>
    %c0_4 = arith.constant 0 : index
    %c0_5 = arith.constant 0 : index
    %c0_6 = arith.constant 0 : index
    %4 = vector.load %arg3[%c0_4, %c0_5, %c0_6] : memref<1x16x256xf32, #tpu.memory_space<vmem>>, vector<1x16x256xf32>
    %5 = vector.shape_cast %4 : vector<1x16x256xf32> to vector<16x256xf32>
    %6 = vector.shape_cast %3 : vector<16x256xf32> to vector<1x16x256xf32>
    tpu.vector_store %arg3[%c0_4, %c0_5, %c0_6], %6 {strides = array<i32>} : memref<1x16x256xf32, #tpu.memory_space<vmem>>, vector<1x16x256xf32>,
    return
  }
  func.func @transform_0(%arg0: i32) -> (i32, i32) {
    %c0_i32 = arith.constant 0 : i32
    %c0_i32_0 = arith.constant 0 : i32
    %c0_i32_1 = arith.constant 0 : i32
    return %c0_i32, %c0_i32_0 : i32, i32
  }
  func.func @transform_1(%arg0: i32) -> (i32, i32, i32) {
    %c0_i32 = arith.constant 0 : i32
    %c0_i32_0 = arith.constant 0 : i32
    %c0_i32_1 = arith.constant 0 : i32
    return %arg0, %c0_i32, %c0_i32_0 : i32, i32, i32
  }
  func.func @transform_2(%arg0: i32) -> (i32, i32, i32) {
    %c0_i32 = arith.constant 0 : i32
    %c0_i32_0 = arith.constant 0 : i32
    %c0_i32_1 = arith.constant 0 : i32
    return %arg0, %c0_i32, %c0_i32_0 : i32, i32, i32
  }
}

</mosaic_0001>

<llo_original>
// kernel: concat3d_pallas.1
$region0: #{concat3d_pallas.1}
  #allocation0 [shape = 'u32[]', space=smem, size = 0x4, offset = 0x4, fixed_abs, tag = 'smem constant byte address 0x4 - core index']
  #allocation1 [shape = 'u32[144,128]{1,0:T(1,128)}', space=vmem, size = 0x12000, scoped, tag = 'internal scratch']
  %s0 = inlined_call_operand.vmem [shape: bf16[16,128], index: 0, kind: input, shape index: {}]
  %s1 = inlined_call_operand.vmem [shape: bf16[2,128,256], index: 1, kind: input, shape index: {}]
  %s2 = inlined_call_operand.vmem [shape: f32[2,16,256], index: 2, kind: output, shape index: {}]
  %s3 = sld [smem:[#allocation0]]
  $region41: #{concat3d_pallas.1} parent=0
    _
  %s5 = ssub.s32 1, %s3
  %s6 = scalar_select 0, %s5, %s3
  loop: start=0, step=1, limit=4
  $region2: #{concat3d_pallas.1} parent=0 // loop_pre_header
    _
  $region3: #{concat3d_pallas.1} parent=0 // loop_header
    %s8 = sphi 0, %s12
    %p9 = scmp.ge.s32.totalorder %s8, 4
    %s16 = sphi 0, %s16
    %s18 = sphi 0, %s16
    %s19 = sphi 0, %s18
    %s33 = sphi 0, %s19
    %s39 = sphi 0, %s41
    %s42 = sphi 0, %s39
    %s43 = sphi 0, %s42
    %s59 = sphi 0, %s43
    %s65 = sphi 0, %s67
    %s68 = sphi 0, %s65
    %s69 = sphi 0, %s68
    %s85 = sphi 0, %s69
  $region4: #{concat3d_pallas.1} parent=0 // loop_header_branch
    %11 = sbr.rel (%p9) target = $region8
  $region5: #{concat3d_pallas.1} parent=0 // loop_body
    %s13 = ssub.s32 %s8, 1
    %s14 = ssub.s32 %s8, 2
    %s15 = sadd.s32 %s8, 1
    %s17 = sadd.s32 %s16, 1
    %p20 = scmp.eq.s32.totalorder %s8, 1
    %p21 = scmp.ne.s32.totalorder %s16, %s18
    %p22 = scmp.eq.s32.totalorder %s8, 0
    %p23 = por %p21, %p22
    %p24 = scmp.ne.s32.totalorder %s16, %s18
    %p25 = scmp.eq.s32.totalorder %s13, 1
    %p26 = por %p24, %p25
    %p27 = scmp.ne.s32.totalorder %s18, %s19
    %p28 = scmp.eq.s32.totalorder %s13, 0
    %p29 = por %p27, %p28
    %p30 = scmp.ne.s32.totalorder %s18, %s19
    %p31 = scmp.eq.s32.totalorder %s14, 1
    %p32 = por %p30, %p31
    %p34 = scmp.ne.s32.totalorder %s19, %s33
    %p35 = scmp.eq.s32.totalorder %s14, 0
    %p36 = por %p34, %p35
    %s37 = ssub.s32 %s8, %s15
    %p38 = scmp.eq.s32.totalorder %s37, 0
    %s40 = sadd.s32 %s39, 1
    %s41 = scalar_select %p38, %s39, %s40
    %p44 = pneg %p38
    %p45 = scmp.eq.s32.totalorder %s8, 1
    %p46 = por %p44, %p45
    %p47 = scmp.ne.s32.totalorder %s39, %s42
    %p48 = scmp.eq.s32.totalorder %s8, 0
    %p49 = por %p47, %p48
    %p50 = scmp.ne.s32.totalorder %s39, %s42
    %p51 = scmp.eq.s32.totalorder %s13, 1
    %p52 = por %p50, %p51
    %p53 = scmp.ne.s32.totalorder %s42, %s43
    %p54 = scmp.eq.s32.totalorder %s13, 0
    %p55 = por %p53, %p54
    %p56 = scmp.ne.s32.totalorder %s42, %s43
    %p57 = scmp.eq.s32.totalorder %s14, 1
    %p58 = por %p56, %p57
    %p60 = scmp.ne.s32.totalorder %s43, %s59
    %p61 = scmp.eq.s32.totalorder %s14, 0
    %p62 = por %p60, %p61
    %s63 = ssub.s32 %s8, %s15
    %p64 = scmp.eq.s32.totalorder %s63, 0
    %s66 = sadd.s32 %s65, 1
    %s67 = scalar_select %p64, %s65, %s66
    %p70 = pneg %p64
    %p71 = scmp.eq.s32.totalorder %s8, 1
    %p72 = por %p70, %p71
    %p73 = scmp.ne.s32.totalorder %s65, %s68
    %p74 = scmp.eq.s32.totalorder %s8, 0
    %p75 = por %p73, %p74
    %p76 = scmp.ne.s32.totalorder %s65, %s68
    %p77 = scmp.eq.s32.totalorder %s13, 1
    %p78 = por %p76, %p77
    %p79 = scmp.ne.s32.totalorder %s68, %s69
    %p80 = scmp.eq.s32.totalorder %s13, 0
    %p81 = por %p79, %p80
    %p82 = scmp.ne.s32.totalorder %s68, %s69
    %p83 = scmp.eq.s32.totalorder %s14, 1
    %p84 = por %p82, %p83
    %p86 = scmp.ne.s32.totalorder %s69, %s85
    %p87 = scmp.eq.s32.totalorder %s14, 0
    %p88 = por %p86, %p87
    %p89 = scmp.le.s32.totalorder 1, %s8
    %p90 = scmp.lt.s32.totalorder %s8, 3
    %p91 = pnand %p89, %p90
    %p92 = pneg %p91
    // Predicated region
    $region9: #{concat3d_pallas.1} parent=5 // pred_check
      _
    $region10: #{concat3d_pallas.1} parent=5 // pred_check_branch
      %94 = sbr.rel (%p91) target = $region12
    $region11: #{concat3d_pallas.1} parent=5 // pred_region
      %s95 = ssub.s32 %s8, 1
      // Predicated region
      $region13: #{concat3d_pallas.1} parent=11 // pred_check
        %p96 = pneg %p29
      $region14: #{concat3d_pallas.1} parent=11 // pred_check_branch
        %98 = sbr.rel (%p96) target = $region16
      $region15: #{concat3d_pallas.1} parent=11 // pred_region
        _
      $region16: #{concat3d_pallas.1} parent=11 // pred_fallthru
        _
    $region12: #{concat3d_pallas.1} parent=5 // pred_fallthru
      _
    %p99 = scmp.lt.s32.totalorder %s8, 2
    // Predicated region
    $region17: #{concat3d_pallas.1} parent=5 // pred_check
      %p100 = pneg %p99
    $region18: #{concat3d_pallas.1} parent=5 // pred_check_branch
      %102 = sbr.rel (%p100) target = $region20
    $region19: #{concat3d_pallas.1} parent=5 // pred_region
      // Predicated region
      $region21: #{concat3d_pallas.1} parent=19 // pred_check
        %p103 = pneg %p49
      $region22: #{concat3d_pallas.1} parent=19 // pred_check_branch
        %105 = sbr.rel (%p103) target = $region24
      $region23: #{concat3d_pallas.1} parent=19 // pred_region
        %p106 = scmp.lt.s32.totalorder %s8, 1
        %s107 = scalar_select %p106, %s8, 1
        %s108 = smul.addr %s107, 32
        %s109 = smul.addr %s108, 4
        %s110 = scalar_lea.vmem %s1, %s109
      $region24: #{concat3d_pallas.1} parent=19 // pred_fallthru
        _
    $region20: #{concat3d_pallas.1} parent=5 // pred_fallthru
      _
    %p111 = scmp.le.s32.totalorder 1, %s8
    %p112 = scmp.lt.s32.totalorder %s8, 3
    %p113 = pnand %p111, %p112
    %p114 = pneg %p113
    // Predicated region
    $region25: #{concat3d_pallas.1} parent=5 // pred_check
      _
    $region26: #{concat3d_pallas.1} parent=5 // pred_check_branch
      %116 = sbr.rel (%p113) target = $region28
    $region27: #{concat3d_pallas.1} parent=5 // pred_region
      %s117 = ssub.s32 %s8, 1
      %p118 = pneg %p29
      %p119 = pneg %p26
      %p120 = scmp.lt.s32.totalorder %s13, 1
      %s121 = scalar_select %p120, %s13, 1
      %s122 = smul.addr %s121, 32
      %s123 = smul.addr %s122, 4
      %s124 = scalar_lea.vmem %s1, %s123
      %p125 = pneg %p55
      %p126 = pneg %p52
      %p127 = pneg %p81
      %p128 = pneg %p78
      %p129 = scmp.lt.s32.totalorder %s13, 1
      %s130 = scalar_select %p129, %s13, 1
      %s131 = smul.addr %s130, 4
      %s132 = smul.addr %s131, 8
      %s133 = scalar_lea.vmem %s2, %s132
      %p134 = scmp.lt.s32.totalorder %s13, 1
      %s135 = scalar_select %p134, %s13, 1
      %s136 = smul.addr %s135, 32
      %s137 = smul.addr %s136, 4
      %s138 = scalar_lea.vmem %s1, %s137
      %p139 = scmp.lt.s32.totalorder %s13, 1
      %s140 = scalar_select %p139, %s13, 1
      %s141 = smul.addr %s140, 4
      %s142 = smul.addr %s141, 8
      %s143 = scalar_lea.vmem %s2, %s142
      %v145 = vld [vmem:[%s0] sm:$0xf]
      %v146 = vld [vmem:[%s0 + $0x4] sm:$0xf]
      %v147 = vld [vmem:[%s138] sm:$0xff]
      %v148 = vld [vmem:[%s138 + $0x8] sm:$0xff]
      %v149 = vld [vmem:[%s138 + $0x10] sm:$0xff]
      %v150 = vld [vmem:[%s138 + $0x18] sm:$0xff]
      %v151 = vld [vmem:[%s138 + $0x20] sm:$0xff]
      %v152 = vld [vmem:[%s138 + $0x28] sm:$0xff]
      %v153 = vld [vmem:[%s138 + $0x30] sm:$0xff]
      %v154 = vld [vmem:[%s138 + $0x38] sm:$0xff]
      %v155 = vld [vmem:[%s138 + $0x40] sm:$0xff]
      %v156 = vld [vmem:[%s138 + $0x48] sm:$0xff]
      %v157 = vld [vmem:[%s138 + $0x50] sm:$0xff]
      %v158 = vld [vmem:[%s138 + $0x58] sm:$0xff]
      %v159 = vld [vmem:[%s138 + $0x60] sm:$0xff]
      %v160 = vld [vmem:[%s138 + $0x68] sm:$0xff]
      %v161 = vld [vmem:[%s138 + $0x70] sm:$0xff]
      %v162 = vld [vmem:[%s138 + $0x78] sm:$0xff]
      %v165 = vunpack.c.l.b16 %v145
      %v166 = vunpack.c.l.b16 %v146
      %v167 = vpack.c.b16 %v166, %v165
      %v185 = vunpack.c.l.b16 %v147
      %v186 = vunpack.c.h.b16 %v147
      %v187 = vunpack.c.l.b16 %v148
      %v188 = vunpack.c.h.b16 %v148
      %v189 = vunpack.c.l.b16 %v149
      %v190 = vunpack.c.h.b16 %v149
      %v191 = vunpack.c.l.b16 %v150
      %v192 = vunpack.c.h.b16 %v150
      %v193 = vunpack.c.l.b16 %v151
      %v194 = vunpack.c.h.b16 %v151
      %v195 = vunpack.c.l.b16 %v152
      %v196 = vunpack.c.h.b16 %v152
      %v197 = vunpack.c.l.b16 %v153
      %v198 = vunpack.c.h.b16 %v153
      %v199 = vunpack.c.l.b16 %v154
      %v200 = vunpack.c.h.b16 %v154
      %v201 = vunpack.c.l.b16 %v155
      %v202 = vunpack.c.h.b16 %v155
      %v203 = vunpack.c.l.b16 %v156
      %v204 = vunpack.c.h.b16 %v156
      %v205 = vunpack.c.l.b16 %v157
      %v206 = vunpack.c.h.b16 %v157
      %v207 = vunpack.c.l.b16 %v158
      %v208 = vunpack.c.h.b16 %v158
      %v209 = vunpack.c.l.b16 %v159
      %v210 = vunpack.c.h.b16 %v159
      %v211 = vunpack.c.l.b16 %v160
      %v212 = vunpack.c.h.b16 %v160
      %v213 = vunpack.c.l.b16 %v161
      %v214 = vunpack.c.h.b16 %v161
      %v215 = vunpack.c.l.b16 %v162
      %v216 = vunpack.c.h.b16 %v162
      %v217 = vpack.c.b16 %v187, %v185
      %v218 = vpack.c.b16 %v188, %v186
      %v219 = vpack.c.b16 %v191, %v189
      %v220 = vpack.c.b16 %v192, %v190
      %v221 = vpack.c.b16 %v195, %v193
      %v222 = vpack.c.b16 %v196, %v194
      %v223 = vpack.c.b16 %v199, %v197
      %v224 = vpack.c.b16 %v200, %v198
      %v225 = vpack.c.b16 %v203, %v201
      %v226 = vpack.c.b16 %v204, %v202
      %v227 = vpack.c.b16 %v207, %v205
      %v228 = vpack.c.b16 %v208, %v206
      %v229 = vpack.c.b16 %v211, %v209
      %v230 = vpack.c.b16 %v212, %v210
      %v231 = vpack.c.b16 %v215, %v213
      %v232 = vpack.c.b16 %v216, %v214
      %249 = vmatprep.subr.bf16.mxu0 %v232
      %250 = vmatpush1.bf16.msra.mxu0 %v231
      %251 = vmatprep.subr.bf16.mxu0 %v230
      %252 = vmatpush1.bf16.msra.mxu0 %v229
      %253 = vmatprep.subr.bf16.mxu0 %v228
      %254 = vmatpush1.bf16.msra.mxu0 %v227
      %255 = vmatprep.subr.bf16.mxu0 %v226
      %256 = vmatpush1.bf16.msra.mxu0 %v225
      %257 = vmatprep.subr.bf16.mxu0 %v224
      %258 = vmatpush1.bf16.msra.mxu0 %v223
      %259 = vmatprep.subr.bf16.mxu0 %v222
      %260 = vmatpush1.bf16.msra.mxu0 %v221
      %261 = vmatprep.subr.bf16.mxu0 %v220
      %262 = vmatpush1.bf16.msra.mxu0 %v219
      %263 = vmatprep.subr.bf16.mxu0 %v218
      %264 = vmatpush1.bf16.msra.mxu0 %v217
      %265 = vmatprep.subr.bf16.mxu0 0
      %266 = vmatpush2.bf16.msra.mxu0 0
      %267 = vmatprep.subr.bf16.mxu0 0
      %268 = vmatpush2.bf16.msra.mxu0 0
      %269 = vmatprep.subr.bf16.mxu0 0
      %270 = vmatpush2.bf16.msra.mxu0 0
      %271 = vmatprep.subr.bf16.mxu0 0
      %272 = vmatpush2.bf16.msra.mxu0 0
      %273 = vmatprep.subr.bf16.mxu0 0
      %274 = vmatpush2.bf16.msra.mxu0 0
      %275 = vmatprep.subr.bf16.mxu0 0
      %276 = vmatpush2.bf16.msra.mxu0 0
      %277 = vmatprep.subr.bf16.mxu0 0
      %278 = vmatpush2.bf16.msra.mxu0 0
      %279 = vmatprep.subr.bf16.mxu0 0
      %280 = vmatpush2.bf16.msra.mxu0 0
      %281 = vmatprep.mubr.bf16.mxu0 0
      %282 = vmatmul.mubr.bf16.gmra.mxu0 %v167
      %v283 = vpop.f32.mrf.mxu0
      %v284 = vadd.f32 0.0, %v283
      %v285 = vpop.f32.mrf.mxu0
      %v286 = vadd.f32 0.0, %v285
      %v287 = vpop.f32.mrf.mxu0
      %v288 = vadd.f32 0.0, %v287
      %v289 = vpop.f32.mrf.mxu0
      %v290 = vadd.f32 0.0, %v289
      %291 = vdwg.mxu0
      %292 = vst [vmem:[%s143] sm:$0xff] %v284
      %293 = vst [vmem:[%s143 + $0x8] sm:$0xff] %v286
      %294 = vst [vmem:[%s143 + $0x10] sm:$0xff] %v288
      %295 = vst [vmem:[%s143 + $0x18] sm:$0xff] %v290
      %p296 = scmp.lt.s32.totalorder %s13, 1
      %s297 = scalar_select %p296, %s13, 1
      %s298 = smul.addr %s297, 4
      %s299 = smul.addr %s298, 8
      %s300 = scalar_lea.vmem %s2, %s299
      // Predicated region
      $region29: #{concat3d_pallas.1} parent=27 // pred_check
        %p301 = pneg %p78
      $region30: #{concat3d_pallas.1} parent=27 // pred_check_branch
        %303 = sbr.rel (%p301) target = $region32
      $region31: #{concat3d_pallas.1} parent=27 // pred_region
        _
      $region32: #{concat3d_pallas.1} parent=27 // pred_fallthru
        _
    $region28: #{concat3d_pallas.1} parent=5 // pred_fallthru
      _
    %p304 = scmp.le.s32.totalorder 2, %s8
    // Predicated region
    $region33: #{concat3d_pallas.1} parent=5 // pred_check
      %p305 = pneg %p304
    $region34: #{concat3d_pallas.1} parent=5 // pred_check_branch
      %307 = sbr.rel (%p305) target = $region36
    $region35: #{concat3d_pallas.1} parent=5 // pred_region
      %s308 = ssub.s32 %s8, 2
      // Predicated region
      $region37: #{concat3d_pallas.1} parent=35 // pred_check
        %p309 = pneg %p84
      $region38: #{concat3d_pallas.1} parent=35 // pred_check_branch
        %311 = sbr.rel (%p309) target = $region40
      $region39: #{concat3d_pallas.1} parent=35 // pred_region
        %p312 = scmp.lt.s32.totalorder %s14, 1
        %s313 = scalar_select %p312, %s14, 1
        %s314 = smul.addr %s313, 4
        %s315 = smul.addr %s314, 8
        %s316 = scalar_lea.vmem %s2, %s315
      $region40: #{concat3d_pallas.1} parent=35 // pred_fallthru
        _
    $region36: #{concat3d_pallas.1} parent=5 // pred_fallthru
      _
  $region6: #{concat3d_pallas.1} parent=0 // loop_footer
    %s12 = sadd.s32 1, %s8
  $region7: #{concat3d_pallas.1} parent=0 // loop_footer_branch
    %7 = sbr.rel target = $region3
  $region8: #{concat3d_pallas.1} parent=0 // loop_exit
    _

</llo_original>
